<compile_context>
chip_gen: v6e
topology: v6e:2x2x1
jax: 0.10.0
libtpu: 0.0.40
codegen_flags: <defaults>
</compile_context>

<pallas_src>
import functools

import jax
import jax.numpy as jnp
from jax.experimental import pallas as pl
from jax.experimental.pallas import tpu as pltpu


def _round_up(x: int, m: int) -> int:
    return (x + m - 1) // m * m


@functools.lru_cache(maxsize=None)
def _vmem_capacity_bytes() -> int:
    """Trace-time VMEM capacity query; conservative (v7x-sized) fallback."""
    try:
        info_fn = getattr(pltpu, "get_tpu_info", None)
        if info_fn is not None:
            return int(info_fn().vmem_capacity_bytes)
    except Exception:
        pass
    return 64 * 1024 * 1024


def _matmul_bias_kernel(x_ref, w_ref, b_ref, o_ref, acc_ref):
    """One (tm, tn) output tile of R = X @ W + b, accumulated over the K grid axis.

    x_ref : [tm, tk]   stacked [xr ; xi] activations
    w_ref : [tk, tn]   packed [Wr | Wi | 0-pad] weights (already [in, out] layout)
    b_ref : [1,  tn]   packed [br | bi | 0-pad] bias
    o_ref : [tm, tn]   packed output slab (f32)
    acc_ref: [tm, tn]  f32 accumulator scratch (lives across the K axis)
    """
    k = pl.program_id(2)

    @pl.when(k == 0)
    def _init():
        acc_ref[...] = jnp.zeros_like(acc_ref)

    acc_ref[...] += jnp.dot(x_ref[...], w_ref[...],
                            preferred_element_type=jnp.float32)

    @pl.when(k == pl.num_programs(2) - 1)
    def _finalize():
        o_ref[...] = (acc_ref[...] + b_ref[...]).astype(o_ref.dtype)


def _select_tiles(m_aligned: int, k_pad: int, n_total: int, op_bytes: int):
    """Pick (tm, tn, tk, m_pad, vmem_limit) with generation-aware VMEM caps."""
    big_vmem = _vmem_capacity_bytes() >= 96 * 1024 * 1024   # v5e/v6e: 128 MiB physical
    tm_cap = 1024 if big_vmem else 512
    tk_cap = 2048 if big_vmem else 1024
    tn_cap = 1024

    # tm: largest candidate whose M padding is <= 1/8 of the real rows (zero-pad OK).
    tm = 8
    for cand in (1024, 512, 256, 128, 64, 32, 16, 8):
        if cand > tm_cap:
            continue
        pad = _round_up(m_aligned, cand) - m_aligned
        if pad == 0 or pad * 8 <= m_aligned:
            tm = cand
            break
    m_pad = _round_up(m_aligned, tm)

    def _pick(total, cap):
        for cand in (2048, 1024, 512, 256, 128):
            if cand <= cap and cand <= total and total % cand == 0:
                return cand
        return 128

    tk = _pick(k_pad, tk_cap)
    tn = _pick(n_total, tn_cap)

    # Guarantee >=2 blocks on a "parallel" grid axis so both v7x TensorCores get work.
    if (m_pad // tm) * (n_total // tn) < 2:
        if n_total >= 256:
            tn = 128
        elif tm >= 16 and m_aligned >= 16:
            tm = tm // 2
            m_pad = _round_up(m_aligned, tm)

    # VMEM budget: double-buffered input/output tiles + f32 accumulator, plus headroom.
    live = (2 * (tm * tk + tk * tn + tn) * op_bytes   # inputs (double-buffered)
            + 2 * tm * tn * 4                         # output  (double-buffered, f32)
            + tm * tn * 4)                            # accumulator scratch
    cap = (96 if big_vmem else 48) * 1024 * 1024
    vmem_limit = int(min(max(live + (8 << 20), 32 << 20), cap))
    return tm, tn, tk, m_pad, vmem_limit


def _packed_linear(x_packed, w_packed, b_packed, *, tm, tn, tk, vmem_limit_bytes):
    m, k_dim = x_packed.shape
    _, n = w_packed.shape
    grid = (m // tm, n // tn, k_dim // tk)
    op_bytes = jnp.dtype(x_packed.dtype).itemsize
    cost = pl.CostEstimate(
        flops=2 * m * n * k_dim,
        transcendentals=0,
        bytes_accessed=op_bytes * (m * k_dim + k_dim * n) + 4 * (m * n + n))
    return pl.pallas_call(
        _matmul_bias_kernel,
        out_shape=jax.ShapeDtypeStruct((m, n), jnp.float32),
        grid_spec=pltpu.PrefetchScalarGridSpec(
            num_scalar_prefetch=0,
            grid=grid,
            in_specs=[
                pl.BlockSpec((tm, tk), lambda i, j, k: (i, k)),
                pl.BlockSpec((tk, tn), lambda i, j, k: (k, j)),
                pl.BlockSpec((1, tn), lambda i, j, k: (0, j)),
            ],
            out_specs=pl.BlockSpec((tm, tn), lambda i, j, k: (i, j)),
            scratch_shapes=[pltpu.VMEM((tm, tn), jnp.float32)],
        ),
        compiler_params=pltpu.CompilerParams(
            dimension_semantics=("parallel", "parallel", "arbitrary"),
            vmem_limit_bytes=vmem_limit_bytes,
            allow_input_fusion=[True, False, False],
        ),
        cost_estimate=cost,
    )(x_packed, w_packed, b_packed)


def pack_params(w_real, b_real, w_imag, b_imag, *, use_bf16: bool = False):
    """One-time parameter packing (do at parameter creation, not per step).

    Layout (only the TOTAL width is padded to a multiple of 128):
      w_packed : [K_pad, N]  = [ Wr^T | Wi^T | 0-pad ],  N = round_up(2*out, 128)
      b_packed : [1, N]      = [ br   | bi   | 0-pad ]   (kept in f32)
    """
    out_features, in_features = w_real.shape
    op_dtype = jnp.bfloat16 if use_bf16 else jnp.float32
    k_pad = _round_up(in_features, 128)
    n_total = _round_up(2 * out_features, 128)

    wr_t = jnp.transpose(w_real).astype(jnp.float32)   # [in, out]
    wi_t = jnp.transpose(w_imag).astype(jnp.float32)   # [in, out]

    w_packed = jnp.zeros((k_pad, n_total), jnp.float32)
    w_packed = w_packed.at[:in_features, :out_features].set(wr_t)
    w_packed = w_packed.at[:in_features, out_features:2 * out_features].set(wi_t)
    w_packed = w_packed.astype(op_dtype)

    b_packed = jnp.zeros((1, n_total), jnp.float32)
    b_packed = b_packed.at[0, :out_features].set(b_real.astype(jnp.float32))
    b_packed = b_packed.at[0, out_features:2 * out_features].set(
        b_imag.astype(jnp.float32))
    return w_packed, b_packed, out_features


@functools.partial(jax.jit, static_argnames=("out_features",))
def complex_lazy_linear_apply(x, w_packed, b_packed, out_features):
    """Forward pass. x: complex64 [..., in_features] -> complex64 [..., out_features]."""
    in_features = x.shape[-1]
    lead_shape = x.shape[:-1]
    k_pad, n_total = w_packed.shape
    op_dtype = w_packed.dtype
    op_bytes = jnp.dtype(op_dtype).itemsize

    xr = jnp.real(x).astype(op_dtype).reshape(-1, in_features)
    xi = jnp.imag(x).astype(op_dtype).reshape(-1, in_features)
    batch = xr.shape[0]

    # Stack real rows over imag rows: one matmul yields all four products
    #   R[xr-rows, Wr-cols] = xr@Wr^T + br    R[xr-rows, Wi-cols] = xr@Wi^T + bi
    #   R[xi-rows, Wr-cols] = xi@Wr^T + br    R[xi-rows, Wi-cols] = xi@Wi^T + bi
    x_stacked = jnp.concatenate([xr, xi], axis=0)        # [2B, in]
    m_aligned = _round_up(2 * batch, 8)

    tm, tn, tk, m_pad, vmem_limit = _select_tiles(m_aligned, k_pad, n_total, op_bytes)

    # Single fusible pad (allow_input_fusion) instead of a materialized padded HBM copy.
    x_packed = jnp.pad(x_stacked,
                       ((0, m_pad - 2 * batch), (0, k_pad - in_features)))

    r = _packed_linear(x_packed, w_packed, b_packed,
                       tm=tm, tn=tn, tk=tk, vmem_limit_bytes=vmem_limit)

    # Unaligned slices are fine here (wrapper side, not in the kernel).
    rr_wr = r[:batch, :out_features]                              # xr @ Wr^T + br
    rr_wi = r[:batch, out_features:2 * out_features]              # xr @ Wi^T + bi
    ri_wr = r[batch:2 * batch, :out_features]                     # xi @ Wr^T + br
    ri_wi = r[batch:2 * batch, out_features:2 * out_features]     # xi @ Wi^T + bi

    real_out = rr_wr - ri_wi   # real_layer(xr) - imag_layer(xi)
    imag_out = rr_wi + ri_wr   # imag_layer(xr) + real_layer(xi)
    out = jax.lax.complex(real_out, imag_out)                     # complex64
    return out.reshape(*lead_shape, out_features)


def complex_lazy_linear(x, w_real, b_real, w_imag, b_imag, *, use_bf16: bool = False):
    """Convenience wrapper taking PyTorch-layout params ([out, in] weights)."""
    w_packed, b_packed, out_features = pack_params(
        w_real, b_real, w_imag, b_imag, use_bf16=use_bf16)
    return complex_lazy_linear_apply(x, w_packed, b_packed, out_features)


if __name__ == "__main__":
    key = jax.random.PRNGKey(0)
    k1, k2, k3, k4, k5, k6 = jax.random.split(key, 6)

    in_features = 32
    out_features = 16
    batch, seq = 2, 8

    # Deterministic complex input [2, 8, 32]
    x = (jax.random.normal(k1, (batch, seq, in_features), dtype=jnp.float32)
         + 1j * jax.random.normal(k2, (batch, seq, in_features), dtype=jnp.float32)
         ).astype(jnp.complex64)

    # Deterministic parameters (LazyLinear would materialize these at first call).
    bound = 1.0 / (in_features ** 0.5)
    w_real = jax.random.uniform(k3, (out_features, in_features),
                                minval=-bound, maxval=bound, dtype=jnp.float32)
    b_real = jax.random.uniform(k4, (out_features,),
                                minval=-bound, maxval=bound, dtype=jnp.float32)
    w_imag = jax.random.uniform(k5, (out_features, in_features),
                                minval=-bound, maxval=bound, dtype=jnp.float32)
    b_imag = jax.random.uniform(k6, (out_features,),
                                minval=-bound, maxval=bound, dtype=jnp.float32)

    # Default f32 path (matches PyTorch numerics).
    out = complex_lazy_linear(x, w_real, b_real, w_imag, b_imag)
    out = jax.block_until_ready(out)

    # Pure-JAX reference for sanity check.
    xr = jnp.real(x)
    xi = jnp.imag(x)
    real_layer = lambda t: t @ w_real.T + b_real
    imag_layer = lambda t: t @ w_imag.T + b_imag
    ref = (real_layer(xr) - imag_layer(xi)) + 1j * (imag_layer(xr) + real_layer(xi))

    assert out.shape == (batch, seq, out_features)
    assert out.dtype == jnp.complex64
    assert jnp.allclose(out, ref.astype(jnp.complex64), atol=1e-4, rtol=1e-4)

    # Opt-in bf16 operand path (MXU-native, halves DMA bytes; looser tolerance).
    out_bf16 = complex_lazy_linear(x, w_real, b_real, w_imag, b_imag, use_bf16=True)
    out_bf16 = jax.block_until_ready(out_bf16)
    assert jnp.allclose(out_bf16, ref.astype(jnp.complex64), atol=5e-2, rtol=5e-2)

    print("KERNEL_OK")
</pallas_src>

<mosaic_0001>
module attributes {stable_mosaic.version = 11 : i64} {
  func.func @_matmul_bias_kernel(%arg0: i32, %arg1: i32, %arg2: i32, %arg3: memref<16x128xf32, #tpu.memory_space<vmem>>, %arg4: memref<128x128xf32, #tpu.memory_space<vmem>>, %arg5: memref<1x128xf32, #tpu.memory_space<vmem>>, %arg6: memref<16x128xf32, #tpu.memory_space<vmem>>, %arg7: memref<16x128xf32, #tpu.memory_space<vmem>>) attributes {dimension_semantics = [#tpu.dimension_semantics<parallel>, #tpu.dimension_semantics<parallel>, #tpu.dimension_semantics<arbitrary>], iteration_bounds = array<i64: 2, 1, 1>, scalar_prefetch = 0 : i64, scratch_operands = 1 : i64, tpu.core_type = #tpu.core_type<tc>, window_params = [{transform_indices = @transform_0, window_bounds = array<i64: 16, 128>}, {transform_indices = @transform_1, window_bounds = array<i64: 128, 128>}, {transform_indices = @transform_2, window_bounds = array<i64: 1, 128>}, {transform_indices = @transform_3, window_bounds = array<i64: 16, 128>}]} {
    %c0_i32 = arith.constant 0 : i32
    %0 = arith.cmpi eq, %arg2, %c0_i32 : i32
    %1 = arith.extui %0 : i1 to i32
    %c0_i32_0 = arith.constant 0 : i32
    %2 = arith.cmpi ne, %1, %c0_i32_0 : i32
    scf.if %2 {
      %cst_10 = arith.constant 0.000000e+00 : f32
      %12 = vector.broadcast %cst_10 : f32 to vector<16x128xf32>
      %c0_11 = arith.constant 0 : index
      %c0_12 = arith.constant 0 : index
      %13 = vector.load %arg7[%c0_11, %c0_12] : memref<16x128xf32, #tpu.memory_space<vmem>>, vector<16x128xf32>
      tpu.vector_store %arg7[%c0_11, %c0_12], %12 {strides = array<i32>} : memref<16x128xf32, #tpu.memory_space<vmem>>, vector<16x128xf32>,
    } else {
    }
    %c0 = arith.constant 0 : index
    %c0_1 = arith.constant 0 : index
    %3 = vector.load %arg7[%c0, %c0_1] : memref<16x128xf32, #tpu.memory_space<vmem>>, vector<16x128xf32>
    %c0_2 = arith.constant 0 : index
    %c0_3 = arith.constant 0 : index
    %4 = vector.load %arg3[%c0_2, %c0_3] : memref<16x128xf32, #tpu.memory_space<vmem>>, vector<16x128xf32>
    %c0_4 = arith.constant 0 : index
    %c0_5 = arith.constant 0 : index
    %5 = vector.load %arg4[%c0_4, %c0_5] : memref<128x128xf32, #tpu.memory_space<vmem>>, vector<128x128xf32>
    %cst = arith.constant dense<0.000000e+00> : vector<16x128xf32>
    %6 = tpu.matmul %4, %5, %cst {dimension_numbers = #tpu.dot_dimension_numbers<[1], [0], [0], [1], [0, 0, 1, 1], [], []>} : vector<16x128xf32>, vector<128x128xf32>, vector<16x128xf32> -> vector<16x128xf32>
    %7 = arith.addf %3, %6 : vector<16x128xf32>
    %c0_6 = arith.constant 0 : index
    %c0_7 = arith.constant 0 : index
    %8 = vector.load %arg7[%c0_6, %c0_7] : memref<16x128xf32, #tpu.memory_space<vmem>>, vector<16x128xf32>
    tpu.vector_store %arg7[%c0_6, %c0_7], %7 {strides = array<i32>} : memref<16x128xf32, #tpu.memory_space<vmem>>, vector<16x128xf32>,
    %c0_i32_8 = arith.constant 0 : i32
    %9 = arith.cmpi eq, %arg2, %c0_i32_8 : i32
    %10 = arith.extui %9 : i1 to i32
    %c0_i32_9 = arith.constant 0 : i32
    %11 = arith.cmpi ne, %10, %c0_i32_9 : i32
    scf.if %11 {
      %c0_10 = arith.constant 0 : index
      %c0_11 = arith.constant 0 : index
      %12 = vector.load %arg7[%c0_10, %c0_11] : memref<16x128xf32, #tpu.memory_space<vmem>>, vector<16x128xf32>
      %c0_12 = arith.constant 0 : index
      %c0_13 = arith.constant 0 : index
      %13 = vector.load %arg5[%c0_12, %c0_13] : memref<1x128xf32, #tpu.memory_space<vmem>>, vector<1x128xf32>
      %14 = vector.broadcast %13 : vector<1x128xf32> to vector<16x128xf32>
      %15 = arith.addf %12, %14 : vector<16x128xf32>
      %c0_14 = arith.constant 0 : index
      %c0_15 = arith.constant 0 : index
      %16 = vector.load %arg6[%c0_14, %c0_15] : memref<16x128xf32, #tpu.memory_space<vmem>>, vector<16x128xf32>
      tpu.vector_store %arg6[%c0_14, %c0_15], %15 {strides = array<i32>} : memref<16x128xf32, #tpu.memory_space<vmem>>, vector<16x128xf32>,
    } else {
    }
    return
  }
  func.func @transform_0(%arg0: i32, %arg1: i32, %arg2: i32) -> (i32, i32) {
    %c0_i32 = arith.constant 0 : i32
    return %arg0, %arg2 : i32, i32
  }
  func.func @transform_1(%arg0: i32, %arg1: i32, %arg2: i32) -> (i32, i32) {
    %c0_i32 = arith.constant 0 : i32
    return %arg2, %arg1 : i32, i32
  }
  func.func @transform_2(%arg0: i32, %arg1: i32, %arg2: i32) -> (i32, i32) {
    %c0_i32 = arith.constant 0 : i32
    %c0_i32_0 = arith.constant 0 : i32
    return %c0_i32, %arg1 : i32, i32
  }
  func.func @transform_3(%arg0: i32, %arg1: i32, %arg2: i32) -> (i32, i32) {
    %c0_i32 = arith.constant 0 : i32
    return %arg0, %arg1 : i32, i32
  }
}

</mosaic_0001>

<llo_original>
// kernel: custom-call.1
$region0: #{custom-call.1}
  %s0 = inlined_call_operand.hbm [shape: c64[2,8,32], index: 0, kind: input, shape index: {}]
  %s1 = inlined_call_operand.vmem [shape: f32[2,8,32], index: 1, kind: output, shape index: {}]
  %s2 = scalar_lea.hbm %s0, 256
  $region1: #{custom-call.1} parent=0
    #allocation0 [shape = 's32[1]{0}', space=sflag, size = 0x4, scoped, tag = 'scoped memory for custom-call.1']
    %3 = vsyncpa [#allocation0], 0
    %s4 = sshll.u32 %s1, 4
    %s5 = int_to_ptr.vmem [resolvable:$true] %s4
    %7 = dma.hbm_to_vmem [thread:$0]  %s2, 256, %s5, [#allocation0]
    %8 = dma.done [#allocation0], 256
    %9 = vsyncpa [#allocation0], 1

// kernel: custom-call
$region0: #{custom-call}
  %s0 = inlined_call_operand.hbm [shape: c64[2,8,32], index: 0, kind: input, shape index: {}]
  %s1 = inlined_call_operand.vmem [shape: f32[2,8,32], index: 1, kind: output, shape index: {}]
  $region1: #{custom-call} parent=0
    #allocation0 [shape = 's32[1]{0}', space=sflag, size = 0x4, scoped, tag = 'scoped memory for custom-call']
    %2 = vsyncpa [#allocation0], 0
    %s3 = sshll.u32 %s1, 4
    %s4 = int_to_ptr.vmem [resolvable:$true] %s3
    %6 = dma.hbm_to_vmem [thread:$0]  %s0, 256, %s4, [#allocation0]
    %7 = dma.done [#allocation0], 256
    %8 = vsyncpa [#allocation0], 1

// kernel: custom-call.2
$region0: #{custom-call.2}
  %s0 = inlined_call_operand.vmem [shape: f32[2,8,16], index: 0, kind: input, shape index: {}]
  %s1 = inlined_call_operand.vmem [shape: f32[2,8,16], index: 1, kind: input, shape index: {}]
  %s2 = inlined_call_operand.hbm [shape: c64[2,8,16], index: 2, kind: output, shape index: {}]
  %s3 = scalar_lea.hbm %s2, 256
  $region1: #{custom-call.2} parent=0
    #allocation0 [shape = 's32[1]{0}', space=sflag, size = 0x4, scoped, tag = 'scoped memory for custom-call.2']
    %4 = vsyncpa [#allocation0], 0
    %s5 = sshll.u32 %s0, 4
    %s6 = int_to_ptr.vmem [resolvable:$true] %s5
    %8 = dma.vmem_to_hbm [thread:$0]  %s6, 256, %s2, [#allocation0]
    %9 = dma.done [#allocation0], 256
    %10 = vsyncpa [#allocation0], 1
  $region2: #{custom-call.2} parent=0
    #allocation1 [shape = 's32[1]{0}', space=sflag, size = 0x4, scoped, tag = 'scoped memory for custom-call.2']
    %11 = vsyncpa [#allocation1], 0
    %s12 = sshll.u32 %s1, 4
    %s13 = int_to_ptr.vmem [resolvable:$true] %s12
    %15 = dma.vmem_to_hbm [thread:$0]  %s13, 256, %s3, [#allocation1]
    %16 = dma.done [#allocation1], 256
    %17 = vsyncpa [#allocation1], 1

// kernel: complex_lazy_linear_apply.2
$region0: #{complex_lazy_linear_apply.2}
  #allocation0 [shape = 'u32[]', space=smem, size = 0x4, offset = 0x4, fixed_abs, tag = 'smem constant byte address 0x4 - core index']
  #allocation1 [shape = 'u32[144,128]{1,0:T(1,128)}', space=vmem, size = 0x12000, scoped, tag = 'internal scratch']
  #allocation2 [shape = 'f32[16,128]{1,0:T(8,128)}', space=vmem, size = 0x2000, scoped, tag = 'scratch operand']
  #allocation3 [shape = 'u32[2048]{0}', space=vmem, size = 0x2000, scoped, tag = 'scoped memory for complex_lazy_linear_apply.2']
  #allocation4 [shape = 'u32[2048]{0}', space=vmem, size = 0x2000, scoped, tag = 'scoped memory for complex_lazy_linear_apply.2']
  #allocation5 [shape = 'u32[2048]{0}', space=vmem, size = 0x2000, scoped, tag = 'scoped memory for complex_lazy_linear_apply.2']
  #allocation6 [shape = 'u32[2048]{0}', space=vmem, size = 0x2000, scoped, tag = 'scoped memory for complex_lazy_linear_apply.2']
  #allocation7 [shape = 'u32[2048]{0}', space=vmem, size = 0x2000, scoped, tag = 'scoped memory for complex_lazy_linear_apply.2']
  #allocation8 [shape = 'u32[2048]{0}', space=vmem, size = 0x2000, scoped, tag = 'scoped memory for complex_lazy_linear_apply.2']
  #allocation9 [shape = 'u32[2048]{0}', space=vmem, size = 0x2000, scoped, tag = 'scoped memory for complex_lazy_linear_apply.2']
  #allocation10 [shape = 'u32[2048]{0}', space=vmem, size = 0x2000, scoped, tag = 'scoped memory for complex_lazy_linear_apply.2']
  #allocation11 [shape = 'u32[2048]{0}', space=vmem, size = 0x2000, scoped, tag = 'scoped memory for complex_lazy_linear_apply.2']
  #allocation12 [shape = 'u32[2048]{0}', space=vmem, size = 0x2000, scoped, tag = 'scoped memory for complex_lazy_linear_apply.2']
  %s0 = inlined_call_operand.hbm [shape: f32[128,128], index: 0, kind: input, shape index: {}]
  %s1 = inlined_call_operand.vmem [shape: f32[1,128], index: 1, kind: input, shape index: {}]
  %s2 = inlined_call_operand.vmem [shape: f32[16,32], index: 2, kind: input, shape index: {}]
  %s3 = inlined_call_operand.<no memory space> [shape: f32[], index: 3, kind: input, shape index: {}]
  %s4 = inlined_call_operand.vmem [shape: f32[16,32], index: 4, kind: input, shape index: {}]
  %s5 = inlined_call_operand.<no memory space> [shape: f32[], index: 5, kind: input, shape index: {}]
  %s6 = inlined_call_operand.<no memory space> [shape: s32[], index: 6, kind: input, shape index: {}]
  %s7 = inlined_call_operand.vmem [shape: f32[32,128], index: 7, kind: output, shape index: {}]
  %s8 = sld [smem:[#allocation0]]
  $region61: #{complex_lazy_linear_apply.2} parent=0
    _
  %s10 = ssub.s32 1, %s8
  %s11 = scalar_select 0, %s10, %s8
  %v12 = vstv %s3
  %v13 = vstv %s3
  %v14 = vstv %s5
  %v15 = vstv %s6
  $region1: #{complex_lazy_linear_apply.2} parent=0
    #allocation13 [shape = 'u8[65536]{0}', space=vmem, size = 0x10000, scoped, tag = 'input window, operand 1, single buffered']
    #allocation14 [shape = 's32[2]{0}', space=sflag, size = 0x8, scoped, tag = 'scoped memory for complex_lazy_linear_apply.2']
    %16 = vsyncpa [#allocation14], 0
    loop: start=0, step=1, limit=4
    $region2: #{complex_lazy_linear_apply.2} parent=1 // loop_pre_header
      _
    $region3: #{complex_lazy_linear_apply.2} parent=1 // loop_header
      %s18 = sphi 0, %s22
      %p19 = scmp.ge.s32.totalorder %s18, 4
      %s25 = sphi 0, %s44
      %s26 = sphi 0, %s40
      %s27 = sphi 0, %s36
      %s28 = sphi 0, %s25
      %s29 = sphi 0, %s26
      %s30 = sphi 0, %s27
      %s31 = sphi 0, %s28
      %s32 = sphi 0, %s29
      %s33 = sphi 0, %s30
      %s49 = sphi 0, %s51
      %s52 = sphi 0, %s49
      %s53 = sphi 0, %s52
      %s69 = sphi 0, %s53
      %s77 = sphi 0, %s79
      %s80 = sphi 0, %s77
      %s81 = sphi 0, %s80
      %s97 = sphi 0, %s81
      %s105 = sphi 0, %s107
      %s108 = sphi 0, %s105
      %s109 = sphi 0, %s108
      %s125 = sphi 0, %s109
      %s131 = sphi 0, %s133
      %s134 = sphi 0, %s131
      %s135 = sphi 0, %s134
      %s151 = sphi 0, %s135
      %s159 = sphi 0, %s161
      %s162 = sphi 0, %s159
      %s163 = sphi 0, %s162
      %s179 = sphi 0, %s163
    $region4: #{complex_lazy_linear_apply.2} parent=1 // loop_header_branch
      %21 = sbr.rel (%p19) target = $region8
    $region5: #{complex_lazy_linear_apply.2} parent=1 // loop_body
      %s23 = ssub.s32 %s18, 1
      %s24 = ssub.s32 %s18, 2
      %s34 = sadd.s32 1, %s27
      %p35 = scmp.ge.s32.totalorder %s34, 1
      %s36 = scalar_select %p35, 0, %s34
      %s37 = sadd.s32 1, %s26
      %s38 = scalar_select %p35, %s37, %s26
      %p39 = scmp.ge.s32.totalorder %s38, 1
      %s40 = scalar_select %p39, 0, %s38
      %s41 = sadd.s32 1, %s25
      %s42 = scalar_select %p39, %s41, %s25
      %p43 = scmp.ge.s32.totalorder %s42, 2
      %s44 = scalar_select %p43, 0, %s42
      %s45 = ssub.s32 %s25, %s44
      %s46 = ssub.s32 %s27, %s36
      %s47 = sor.u32 %s45, %s46
      %p48 = scmp.eq.s32.totalorder %s47, 0
      %s50 = sadd.s32 %s49, 1
      %s51 = scalar_select %p48, %s49, %s50
      %p54 = pneg %p48
      %p55 = scmp.eq.s32.totalorder %s18, 1
      %p56 = por %p54, %p55
      %p57 = scmp.ne.s32.totalorder %s49, %s52
      %p58 = scmp.eq.s32.totalorder %s18, 0
      %p59 = por %p57, %p58
      %p60 = scmp.ne.s32.totalorder %s49, %s52
      %p61 = scmp.eq.s32.totalorder %s23, 1
      %p62 = por %p60, %p61
      %p63 = scmp.ne.s32.totalorder %s52, %s53
      %p64 = scmp.eq.s32.totalorder %s23, 0
      %p65 = por %p63, %p64
      %p66 = scmp.ne.s32.totalorder %s52, %s53
      %p67 = scmp.eq.s32.totalorder %s24, 1
      %p68 = por %p66, %p67
      %p70 = scmp.ne.s32.totalorder %s53, %s69
      %p71 = scmp.eq.s32.totalorder %s24, 0
      %p72 = por %p70, %p71
      %s73 = ssub.s32 %s25, %s44
      %s74 = ssub.s32 %s27, %s36
      %s75 = sor.u32 %s73, %s74
      %p76 = scmp.eq.s32.totalorder %s75, 0
      %s78 = sadd.s32 %s77, 1
      %s79 = scalar_select %p76, %s77, %s78
      %p82 = pneg %p76
      %p83 = scmp.eq.s32.totalorder %s18, 1
      %p84 = por %p82, %p83
      %p85 = scmp.ne.s32.totalorder %s77, %s80
      %p86 = scmp.eq.s32.totalorder %s18, 0
      %p87 = por %p85, %p86
      %p88 = scmp.ne.s32.totalorder %s77, %s80
      %p89 = scmp.eq.s32.totalorder %s23, 1
      %p90 = por %p88, %p89
      %p91 = scmp.ne.s32.totalorder %s80, %s81
      %p92 = scmp.eq.s32.totalorder %s23, 0
      %p93 = por %p91, %p92
      %p94 = scmp.ne.s32.totalorder %s80, %s81
      %p95 = scmp.eq.s32.totalorder %s24, 1
      %p96 = por %p94, %p95
      %p98 = scmp.ne.s32.totalorder %s81, %s97
      %p99 = scmp.eq.s32.totalorder %s24, 0
      %p100 = por %p98, %p99
      %s101 = ssub.s32 %s27, %s36
      %s102 = ssub.s32 %s26, %s40
      %s103 = sor.u32 %s101, %s102
      %p104 = scmp.eq.s32.totalorder %s103, 0
      %s106 = sadd.s32 %s105, 1
      %s107 = scalar_select %p104, %s105, %s106
      %p110 = pneg %p104
      %p111 = scmp.eq.s32.totalorder %s18, 1
      %p112 = por %p110, %p111
      %p113 = scmp.ne.s32.totalorder %s105, %s108
      %p114 = scmp.eq.s32.totalorder %s18, 0
      %p115 = por %p113, %p114
      %p116 = scmp.ne.s32.totalorder %s105, %s108
      %p117 = scmp.eq.s32.totalorder %s23, 1
      %p118 = por %p116, %p117
      %p119 = scmp.ne.s32.totalorder %s108, %s109
      %p120 = scmp.eq.s32.totalorder %s23, 0
      %p121 = por %p119, %p120
      %p122 = scmp.ne.s32.totalorder %s108, %s109
      %p123 = scmp.eq.s32.totalorder %s24, 1
      %p124 = por %p122, %p123
      %p126 = scmp.ne.s32.totalorder %s109, %s125
      %p127 = scmp.eq.s32.totalorder %s24, 0
      %p128 = por %p126, %p127
      %s129 = ssub.s32 %s26, %s40
      %p130 = scmp.eq.s32.totalorder %s129, 0
      %s132 = sadd.s32 %s131, 1
      %s133 = scalar_select %p130, %s131, %s132
      %p136 = pneg %p130
      %p137 = scmp.eq.s32.totalorder %s18, 1
      %p138 = por %p136, %p137
      %p139 = scmp.ne.s32.totalorder %s131, %s134
      %p140 = scmp.eq.s32.totalorder %s18, 0
      %p141 = por %p139, %p140
      %p142 = scmp.ne.s32.totalorder %s131, %s134
      %p143 = scmp.eq.s32.totalorder %s23, 1
      %p144 = por %p142, %p143
      %p145 = scmp.ne.s32.totalorder %s134, %s135
      %p146 = scmp.eq.s32.totalorder %s23, 0
      %p147 = por %p145, %p146
      %p148 = scmp.ne.s32.totalorder %s134, %s135
      %p149 = scmp.eq.s32.totalorder %s24, 1
      %p150 = por %p148, %p149
      %p152 = scmp.ne.s32.totalorder %s135, %s151
      %p153 = scmp.eq.s32.totalorder %s24, 0
      %p154 = por %p152, %p153
      %s155 = ssub.s32 %s25, %s44
      %s156 = ssub.s32 %s26, %s40
      %s157 = sor.u32 %s155, %s156
      %p158 = scmp.eq.s32.totalorder %s157, 0
      %s160 = sadd.s32 %s159, 1
      %s161 = scalar_select %p158, %s159, %s160
      %p164 = pneg %p158
      %p165 = scmp.eq.s32.totalorder %s18, 1
      %p166 = por %p164, %p165
      %p167 = scmp.ne.s32.totalorder %s159, %s162
      %p168 = scmp.eq.s32.totalorder %s18, 0
      %p169 = por %p167, %p168
      %p170 = scmp.ne.s32.totalorder %s159, %s162
      %p171 = scmp.eq.s32.totalorder %s23, 1
      %p172 = por %p170, %p171
      %p173 = scmp.ne.s32.totalorder %s162, %s163
      %p174 = scmp.eq.s32.totalorder %s23, 0
      %p175 = por %p173, %p174
      %p176 = scmp.ne.s32.totalorder %s162, %s163
      %p177 = scmp.eq.s32.totalorder %s24, 1
      %p178 = por %p176, %p177
      %p180 = scmp.ne.s32.totalorder %s163, %s179
      %p181 = scmp.eq.s32.totalorder %s24, 0
      %p182 = por %p180, %p181
      %p183 = scmp.le.s32.totalorder 1, %s18
      %p184 = scmp.lt.s32.totalorder %s18, 3
      %p185 = pnand %p183, %p184
      %p186 = pneg %p185
      // Predicated region
      $region9: #{complex_lazy_linear_apply.2} parent=5 // pred_check
        _
      $region10: #{complex_lazy_linear_apply.2} parent=5 // pred_check_branch
        %188 = sbr.rel (%p185) target = $region12
      $region11: #{complex_lazy_linear_apply.2} parent=5 // pred_region
        %s189 = ssub.s32 %s18, 1
        // Predicated region
        $region13: #{complex_lazy_linear_apply.2} parent=11 // pred_check
          %p190 = pneg %p121
        $region14: #{complex_lazy_linear_apply.2} parent=11 // pred_check_branch
          %192 = sbr.rel (%p190) target = $region16
        $region15: #{complex_lazy_linear_apply.2} parent=11 // pred_region
          %s193 = smul.u32 16, %s30
          %s195 = ssub.s32 2048, 2048
          %196 = vsyncadd [#allocation14], %s195
          %s197 = sadd.s32 %s29, %s193
          %s198 = smul.addr %s197, 128
          %s199 = scalar_lea.hbm %s0, %s198
          %s200 = sshll.u32 [#allocation13], 4
          %s201 = int_to_ptr.vmem [resolvable:$true] %s200
          %206 = dma.hbm_to_vmem [thread:$0]  %s199, 2048, %s201, [#allocation14], 128, 128, 8
        $region16: #{complex_lazy_linear_apply.2} parent=11 // pred_fallthru
          _
        // Predicated region
        $region17: #{complex_lazy_linear_apply.2} parent=11 // pred_check
          %p207 = pneg %p147
        $region18: #{complex_lazy_linear_apply.2} parent=11 // pred_check_branch
          %209 = sbr.rel (%p207) target = $region20
        $region19: #{complex_lazy_linear_apply.2} parent=11 // pred_region
          %p210 = scmp.lt.s32.totalorder %s29, 0
          %s211 = scalar_select %p210, %s29, 0
          %s212 = scalar_lea.vmem %s1, %s211
        $region20: #{complex_lazy_linear_apply.2} parent=11 // pred_fallthru
          _
      $region12: #{complex_lazy_linear_apply.2} parent=5 // pred_fallthru
        _
      %p213 = scmp.lt.s32.totalorder %s18, 2
      // Predicated region
      $region21: #{complex_lazy_linear_apply.2} parent=5 // pred_check
        %p214 = pneg %p213
      $region22: #{complex_lazy_linear_apply.2} parent=5 // pred_check_branch
        %216 = sbr.rel (%p214) target = $region24
      $region23: #{complex_lazy_linear_apply.2} parent=5 // pred_region
        // Predicated region
        $region25: #{complex_lazy_linear_apply.2} parent=23 // pred_check
          %p217 = pneg %p59
        $region26: #{complex_lazy_linear_apply.2} parent=23 // pred_check_branch
          %219 = sbr.rel (%p217) target = $region28
        $region27: #{complex_lazy_linear_apply.2} parent=23 // pred_region
          %s220 = smul.u32 2, %s25
          %s221 = ssub.s32 2, %s220
          %s222 = ssub.s32 2, %s221
          %s223 = smul.u32 128, %s222
          %s224 = ssub.s32 1, %s27
          %s225 = smul.u32 %s223, %s224
          %s226 = ssub.s32 %s220, 2
          %p227 = scmp.lt.s32.totalorder %s226, 1
          %s228 = scalar_select %p227, %s226, 1
          %p229 = scmp.lt.s32.totalorder %s27, 0
          %s230 = scalar_select %p229, %s27, 0
          %s231 = sadd.s32 %s230, %s228
          %s232 = smul.addr %s231, 8
          %s233 = scalar_lea.vmem %s2, %s232
          %s234 = smul.u32 2, %s25
          %s235 = ssub.s32 2, %s234
          %s236 = ssub.s32 2, %s235
          %s237 = smul.u32 128, %s236
          %s238 = ssub.s32 1, %s27
          %s239 = smul.u32 %s237, %s238
        $region28: #{complex_lazy_linear_apply.2} parent=23 // pred_fallthru
          _
        // Predicated region
        $region29: #{complex_lazy_linear_apply.2} parent=23 // pred_check
          %p240 = pneg %p87
        $region30: #{complex_lazy_linear_apply.2} parent=23 // pred_check_branch
          %242 = sbr.rel (%p240) target = $region32
        $region31: #{complex_lazy_linear_apply.2} parent=23 // pred_region
          %s243 = smul.u32 2, %s25
          %s244 = ssub.s32 2, %s243
          %s245 = smul.u32 128, %s244
          %s246 = ssub.s32 1, %s27
          %s247 = smul.u32 %s245, %s246
          %p248 = scmp.lt.s32.totalorder %s243, 1
          %s249 = scalar_select %p248, %s243, 1
          %p250 = scmp.lt.s32.totalorder %s27, 0
          %s251 = scalar_select %p250, %s27, 0
          %s252 = sadd.s32 %s251, %s249
          %s253 = smul.addr %s252, 8
          %s254 = scalar_lea.vmem %s4, %s253
          %s255 = smul.u32 2, %s25
          %s256 = ssub.s32 2, %s255
          %s257 = smul.u32 128, %s256
          %s258 = ssub.s32 1, %s27
          %s259 = smul.u32 %s257, %s258
        $region32: #{complex_lazy_linear_apply.2} parent=23 // pred_fallthru
          _
      $region24: #{complex_lazy_linear_apply.2} parent=5 // pred_fallthru
        _
      %p260 = scmp.le.s32.totalorder 1, %s18
      %p261 = scmp.lt.s32.totalorder %s18, 3
      %p262 = pnand %p260, %p261
      %p263 = pneg %p262
      // Predicated region
      $region33: #{complex_lazy_linear_apply.2} parent=5 // pred_check
        _
      $region34: #{complex_lazy_linear_apply.2} parent=5 // pred_check_branch
        %265 = sbr.rel (%p262) target = $region36
      $region35: #{complex_lazy_linear_apply.2} parent=5 // pred_region
        #allocation15 [shape = 'u8[8192]{0}', space=vmem, size = 0x2000, dematerialized = true, scoped, tag = 'FusionAdapter Buffer %select_maximum_fusion.1 = f32[32,128]{1,0:T(8,128)} fusion(%param_2.11, %param_3.8, %param_4.9, %param_5.6, %param_6.5), kind=kLoop, calls=%fused_computation.clone.clone, metadata={op_name="jit(complex_lazy_linear_apply)/concatenate" stack_frame_id=10}']
        %s266 = ssub.s32 %s18, 1
        // Predicated region
        $region37: #{complex_lazy_linear_apply.2} parent=35 // pred_check
          %p267 = pneg %p121
        $region38: #{complex_lazy_linear_apply.2} parent=35 // pred_check_branch
          %269 = sbr.rel (%p267) target = $region40
        $region39: #{complex_lazy_linear_apply.2} parent=35 // pred_region
          %270 = dma.done [#allocation14], 2048
        $region40: #{complex_lazy_linear_apply.2} parent=35 // pred_fallthru
          _
        %s271 = smul.u32 2, %s28
        %s272 = ssub.s32 2, %s271
        %s273 = ssub.s32 2, %s272
        %s274 = smul.u32 128, %s273
        %s275 = ssub.s32 1, %s30
        %s276 = smul.u32 %s274, %s275
        %s277 = ssub.s32 %s271, 2
        %p278 = scmp.lt.s32.totalorder %s277, 1
        %s279 = scalar_select %p278, %s277, 1
        %p280 = scmp.lt.s32.totalorder %s30, 0
        %s281 = scalar_select %p280, %s30, 0
        %s282 = sadd.s32 %s281, %s279
        %s283 = smul.addr %s282, 8
        %s284 = scalar_lea.vmem %s2, %s283
        %p285 = pneg %p65
        %p286 = pneg %p62
        %s287 = smul.u32 2, %s28
        %s288 = ssub.s32 2, %s287
        %s289 = smul.u32 128, %s288
        %s290 = ssub.s32 1, %s30
        %s291 = smul.u32 %s289, %s290
        %p292 = scmp.lt.s32.totalorder %s287, 1
        %s293 = scalar_select %p292, %s287, 1
        %p294 = scmp.lt.s32.totalorder %s30, 0
        %s295 = scalar_select %p294, %s30, 0
        %s296 = sadd.s32 %s295, %s293
        %s297 = smul.addr %s296, 8
        %s298 = scalar_lea.vmem %s4, %s297
        %p299 = pneg %p93
        %p300 = pneg %p90
        %p301 = pneg %p121
        %p302 = pneg %p118
        %p303 = scmp.lt.s32.totalorder %s29, 0
        %s304 = scalar_select %p303, %s29, 0
        %s305 = scalar_lea.vmem %s1, %s304
        %p306 = pneg %p147
        %p307 = pneg %p144
        %p308 = pneg %p175
        %p309 = pneg %p172
        %s310 = smul.u32 2, %s28
        %p311 = scmp.lt.s32.totalorder %s310, 3
        %s312 = scalar_select %p311, %s310, 3
        %p313 = scmp.lt.s32.totalorder %s29, 0
        %s314 = scalar_select %p313, %s29, 0
        %s315 = sadd.s32 %s314, %s312
        %s316 = smul.addr %s315, 8
        %s317 = scalar_lea.vmem %s7, %s316
        %s318 = smul.u32 2, %s28
        %s319 = ssub.s32 2, %s318
        %s320 = ssub.s32 2, %s319
        %s321 = smul.u32 128, %s320
        %s322 = ssub.s32 1, %s30
        %s323 = smul.u32 %s321, %s322
        %s324 = ssub.s32 %s318, 2
        %p325 = scmp.lt.s32.totalorder %s324, 1
        %s326 = scalar_select %p325, %s324, 1
        %p327 = scmp.lt.s32.totalorder %s30, 0
        %s328 = scalar_select %p327, %s30, 0
        %s329 = sadd.s32 %s328, %s326
        %s330 = smul.addr %s329, 8
        %s331 = scalar_lea.vmem %s2, %s330
        %s332 = smul.u32 2, %s28
        %s333 = ssub.s32 2, %s332
        %s334 = ssub.s32 2, %s333
        %s335 = smul.u32 128, %s334
        %s336 = ssub.s32 1, %s30
        %s337 = smul.u32 %s335, %s336
        %s338 = smul.u32 2, %s28
        %s339 = ssub.s32 2, %s338
        %s340 = smul.u32 128, %s339
        %s341 = ssub.s32 1, %s30
        %s342 = smul.u32 %s340, %s341
        %p343 = scmp.lt.s32.totalorder %s338, 1
        %s344 = scalar_select %p343, %s338, 1
        %p345 = scmp.lt.s32.totalorder %s30, 0
        %s346 = scalar_select %p345, %s30, 0
        %s347 = sadd.s32 %s346, %s344
        %s348 = smul.addr %s347, 8
        %s349 = scalar_lea.vmem %s4, %s348
        %s350 = smul.u32 2, %s28
        %s351 = ssub.s32 2, %s350
        %s352 = smul.u32 128, %s351
        %s353 = ssub.s32 1, %s30
        %s354 = smul.u32 %s352, %s353
        %s355 = smul.u32 2, %s28
        %s356 = smul.u32 2, %s28
        %s357 = smul.u32 16, %s30
        %p358 = scmp.lt.s32.totalorder %s29, 0
        %s359 = scalar_select %p358, %s29, 0
        %s360 = scalar_lea.vmem %s1, %s359
        %s361 = smul.u32 2, %s28
        %p362 = scmp.lt.s32.totalorder %s361, 3
        %s363 = scalar_select %p362, %s361, 3
        %p364 = scmp.lt.s32.totalorder %s29, 0
        %s365 = scalar_select %p364, %s29, 0
        %s366 = sadd.s32 %s365, %s363
        %s367 = smul.addr %s366, 8
        %s368 = scalar_lea.vmem %s7, %s367
        %s369 = smul.u32 2, %s28
        %s370 = ssub.s32 %s332, 2
        %s371 = ssub.s32 0, %s30
        %s372 = sor.u32 %s370, %s371
        %p373 = scmp.lt.s32.totalorder %s372, 0
        %s374 = scalar_select %p373, 0, 255
        %v375 = vld [vmem:[%s331] sm:%s374]
        %s376 = ssub.s32 %s332, 2
        %s377 = ssub.s32 0, %s30
        %s378 = sor.u32 %s376, %s377
        %v379 = vstv %s378
        %vm380 = vcmp.lt.s32.totalorder %v379, 0
        %v381 = vsel %vm380, %v12, %v375
        %s382 = smul.addr %s30, 128
        %v383 = vlaneseq
        %v384 = vand.u32 %v383, 127
        %v385 = vstv %s382
        %v386 = vadd.s32 %v384, %v385
        %vm387 = vcmp.lt.s32.totalorder %v386, 32
        %v388 = vsel %vm387, %v381, %v12
        %s389 = ssub.s32 1, %s350
        %s390 = ssub.s32 0, %s30
        %s391 = sor.u32 %s389, %s390
        %p392 = scmp.lt.s32.totalorder %s391, 0
        %s393 = scalar_select %p392, 0, 255
        %v394 = vld [vmem:[%s349] sm:%s393]
        %s395 = ssub.s32 1, %s350
        %s396 = ssub.s32 0, %s30
        %s397 = sor.u32 %s395, %s396
        %v398 = vstv %s397
        %vm399 = vcmp.lt.s32.totalorder %v398, 0
        %v400 = vsel %vm399, %v13, %v394
        %s401 = smul.addr %s30, 128
        %v402 = vlaneseq
        %v403 = vand.u32 %v402, 127
        %v404 = vstv %s401
        %v405 = vadd.s32 %v403, %v404
        %vm406 = vcmp.lt.s32.totalorder %v405, 32
        %v407 = vsel %vm406, %v400, %v13
        %s408 = smul.u32 128, %s30
        %v409 = vlaneseq
        %v410 = vand.u32 %v409, 127
        %v411 = vstv %s408
        %v412 = vadd.s32 %v410, %v411
        %414 = xla_tuple %v412, %v15
        %415 = xla_tuple %414
        %vm416 = vcmp.lt.s32.totalorder %v412, %v15
        %v417 = vsel %vm416, 1, 0
        %418 = xla_tuple %v417
        %419 = xla_tuple %v417, %v407, %v14
        %420 = xla_tuple %419
        %v421 = vsel %vm416, %v407, %v14
        %422 = xla_tuple %v421
        %423 = xla_tuple %v417, %v388, %v14
        %424 = xla_tuple %423
        %v425 = vsel %vm416, %v388, %v14
        %426 = xla_tuple %v425
        %427 = xla_tuple %v421, %v425
        %428 = xla_tuple %427
        %v429 = vmax.f32 %v421, %v425
        %430 = xla_tuple %v429
        %s432 = ssub.s32 256, 1
        %433 = vst [vmem:[#allocation15] sm:%s432] %v429
        %s434 = scalar_lea.vmem %s331, 8
        %s435 = sadd.s32 %s332, 1
        %s436 = ssub.s32 %s435, 2
        %s437 = ssub.s32 0, %s30
        %s438 = sor.u32 %s436, %s437
        %p439 = scmp.lt.s32.totalorder %s438, 0
        %s440 = scalar_select %p439, 0, 255
        %v441 = vld [vmem:[%s434] sm:%s440]
        %s442 = sadd.s32 %s332, 1
        %s443 = ssub.s32 %s442, 2
        %s444 = ssub.s32 0, %s30
        %s445 = sor.u32 %s443, %s444
        %v446 = vstv %s445
        %vm447 = vcmp.lt.s32.totalorder %v446, 0
        %v448 = vsel %vm447, %v12, %v441
        %s449 = smul.addr %s30, 128
        %v450 = vlaneseq
        %v451 = vand.u32 %v450, 127
        %v452 = vstv %s449
        %v453 = vadd.s32 %v451, %v452
        %vm454 = vcmp.lt.s32.totalorder %v453, 32
        %v455 = vsel %vm454, %v448, %v12
        %s456 = scalar_lea.vmem %s349, 8
        %s457 = sadd.s32 %s350, 1
        %s458 = ssub.s32 1, %s457
        %s459 = ssub.s32 0, %s30
        %s460 = sor.u32 %s458, %s459
        %p461 = scmp.lt.s32.totalorder %s460, 0
        %s462 = scalar_select %p461, 0, 255
        %v463 = vld [vmem:[%s456] sm:%s462]
        %s464 = sadd.s32 %s350, 1
        %s465 = ssub.s32 1, %s464
        %s466 = ssub.s32 0, %s30
        %s467 = sor.u32 %s465, %s466
        %v468 = vstv %s467
        %vm469 = vcmp.lt.s32.totalorder %v468, 0
        %v470 = vsel %vm469, %v13, %v463
        %s471 = smul.addr %s30, 128
        %v472 = vlaneseq
        %v473 = vand.u32 %v472, 127
        %v474 = vstv %s471
        %v475 = vadd.s32 %v473, %v474
        %vm476 = vcmp.lt.s32.totalorder %v475, 32
        %v477 = vsel %vm476, %v470, %v13
        %s478 = smul.u32 128, %s30
        %v479 = vlaneseq
        %v480 = vand.u32 %v479, 127
        %v481 = vstv %s478
        %v482 = vadd.s32 %v480, %v481
        %484 = xla_tuple %v482, %v15
        %485 = xla_tuple %484
        %vm486 = vcmp.lt.s32.totalorder %v482, %v15
        %v487 = vsel %vm486, 1, 0
        %488 = xla_tuple %v487
        %489 = xla_tuple %v487, %v477, %v14
        %490 = xla_tuple %489
        %v491 = vsel %vm486, %v477, %v14
        %492 = xla_tuple %v491
        %493 = xla_tuple %v487, %v455, %v14
        %494 = xla_tuple %493
        %v495 = vsel %vm486, %v455, %v14
        %496 = xla_tuple %v495
        %497 = xla_tuple %v491, %v495
        %498 = xla_tuple %497
        %v499 = vmax.f32 %v491, %v495
        %500 = xla_tuple %v499
        %s501 = scalar_lea.vmem [#allocation15], 8
        %s503 = ssub.s32 256, 1
        %504 = vst [vmem:[%s501] sm:%s503] %v499
        %p505 = scmp.eq.s32.totalorder %s30, 0
        // Predicated region
        $region41: #{complex_lazy_linear_apply.2} parent=35 // pred_check
          %p506 = pneg %p505
        $region42: #{complex_lazy_linear_apply.2} parent=35 // pred_check_branch
          %508 = sbr.rel (%p506) target = $region44
        $region43: #{complex_lazy_linear_apply.2} parent=35 // pred_region
          %509 = vst [vmem:[#allocation2] sm:$0xff] 0.0
          %510 = vst [vmem:[#allocation2 + $0x8] sm:$0xff] 0.0
        $region44: #{complex_lazy_linear_apply.2} parent=35 // pred_fallthru
          _
        %v511 = vld [vmem:[#allocation2] sm:$0xff]
        %v512 = vld [vmem:[#allocation2 + $0x8] sm:$0xff]
        %v513 = vld [vmem:[#allocation15] sm:$0xff]
        %v514 = vld [vmem:[#allocation15 + $0x8] sm:$0xff]
        %v515 = vld [vmem:[#allocation13] sm:$0xff]
        %v516 = vld [vmem:[#allocation13 + $0x8] sm:$0xff]
        %v517 = vld [vmem:[#allocation13 + $0x10] sm:$0xff]
        %v518 = vld [vmem:[#allocation13 + $0x18] sm:$0xff]
        %v519 = vld [vmem:[#allocation13 + $0x20] sm:$0xff]
        %v520 = vld [vmem:[#allocation13 + $0x28] sm:$0xff]
        %v521 = vld [vmem:[#allocation13 + $0x30] sm:$0xff]
        %v522 = vld [vmem:[#allocation13 + $0x38] sm:$0xff]
        %v523 = vld [vmem:[#allocation13 + $0x40] sm:$0xff]
        %v524 = vld [vmem:[#allocation13 + $0x48] sm:$0xff]
        %v525 = vld [vmem:[#allocation13 + $0x50] sm:$0xff]
        %v526 = vld [vmem:[#allocation13 + $0x58] sm:$0xff]
        %v527 = vld [vmem:[#allocation13 + $0x60] sm:$0xff]
        %v528 = vld [vmem:[#allocation13 + $0x68] sm:$0xff]
        %v529 = vld [vmem:[#allocation13 + $0x70] sm:$0xff]
        %v530 = vld [vmem:[#allocation13 + $0x78] sm:$0xff]
        %531 = vmatprep.subr.mxu0 0.0
        %532 = vmatpush1.msra.mxu0 %v530
        %533 = vmatprep.subr.mxu0 0.0
        %534 = vmatpush1.msra.mxu0 %v529
        %535 = vmatprep.subr.mxu0 0.0
        %536 = vmatpush1.msra.mxu0 %v528
        %537 = vmatprep.subr.mxu0 0.0
        %538 = vmatpush1.msra.mxu0 %v527
        %539 = vmatprep.subr.mxu0 0.0
        %540 = vmatpush1.msra.mxu0 %v526
        %541 = vmatprep.subr.mxu0 0.0
        %542 = vmatpush1.msra.mxu0 %v525
        %543 = vmatprep.subr.mxu0 0.0
        %544 = vmatpush1.msra.mxu0 %v524
        %545 = vmatprep.subr.mxu0 0.0
        %546 = vmatpush1.msra.mxu0 %v523
        %547 = vmatprep.subr.mxu0 0.0
        %548 = vmatpush1.msra.mxu0 %v522
        %549 = vmatprep.subr.mxu0 0.0
        %550 = vmatpush1.msra.mxu0 %v521
        %551 = vmatprep.subr.mxu0 0.0
        %552 = vmatpush1.msra.mxu0 %v520
        %553 = vmatprep.subr.mxu0 0.0
        %554 = vmatpush1.msra.mxu0 %v519
        %555 = vmatprep.subr.mxu0 0.0
        %556 = vmatpush1.msra.mxu0 %v518
        %557 = vmatprep.subr.mxu0 0.0
        %558 = vmatpush1.msra.mxu0 %v517
        %559 = vmatprep.subr.mxu0 0.0
        %560 = vmatpush1.msra.mxu0 %v516
        %561 = vmatprep.subr.mxu0 0.0
        %562 = vmatpush1.msra.mxu0 %v515
        %563 = vmatprep.subr.mxu0 0.0
        %564 = vmatpush2.msra.mxu0 0.0
        %565 = vmatprep.subr.mxu0 0.0
        %566 = vmatpush2.msra.mxu0 0.0
        %567 = vmatprep.subr.mxu0 0.0
        %568 = vmatpush2.msra.mxu0 0.0
        %569 = vmatprep.subr.mxu0 0.0
        %570 = vmatpush2.msra.mxu0 0.0
        %571 = vmatprep.subr.mxu0 0.0
        %572 = vmatpush2.msra.mxu0 0.0
        %573 = vmatprep.subr.mxu0 0.0
        %574 = vmatpush2.msra.mxu0 0.0
        %575 = vmatprep.subr.mxu0 0.0
        %576 = vmatpush2.msra.mxu0 0.0
        %577 = vmatprep.subr.mxu0 0.0
        %578 = vmatpush2.msra.mxu0 0.0
        %579 = vmatprep.subr.mxu0 0.0
        %580 = vmatpush2.msra.mxu0 0.0
        %581 = vmatprep.subr.mxu0 0.0
        %582 = vmatpush2.msra.mxu0 0.0
        %583 = vmatprep.subr.mxu0 0.0
        %584 = vmatpush2.msra.mxu0 0.0
        %585 = vmatprep.subr.mxu0 0.0
        %586 = vmatpush2.msra.mxu0 0.0
        %587 = vmatprep.subr.mxu0 0.0
        %588 = vmatpush2.msra.mxu0 0.0
        %589 = vmatprep.subr.mxu0 0.0
        %590 = vmatpush2.msra.mxu0 0.0
        %591 = vmatprep.subr.mxu0 0.0
        %592 = vmatpush2.msra.mxu0 0.0
        %593 = vmatprep.subr.mxu0 0.0
        %594 = vmatpush2.msra.mxu0 0.0
        %595 = vmatprep.mubr.f32.mxu0 0.0
        %596 = vmatmul.mubr.f32.gmra.mxu0 %v513
        %v597 = vpop.f32.mrf.mxu0
        %v598 = vadd.f32 0.0, %v597
        %v599 = vpop.f32.mrf.mxu0
        %600 = vmatprep.mubr.f32.mxu0 0.0
        %601 = vmatmul.mubr.f32.gmra.mxu0 %v514
        %v602 = vpop.f32.mrf.mxu0
        %v603 = vadd.f32 0.0, %v602
        %v604 = vpop.f32.mrf.mxu0
        %605 = vdwg.mxu0
        %v606 = vadd.f32 %v511, %v598
        %v607 = vadd.f32 %v512, %v603
        %608 = vst [vmem:[#allocation2] sm:$0xff] %v606
        %609 = vst [vmem:[#allocation2 + $0x8] sm:$0xff] %v607
        // Predicated region
        $region45: #{complex_lazy_linear_apply.2} parent=35 // pred_check
          %p610 = pneg %p505
        $region46: #{complex_lazy_linear_apply.2} parent=35 // pred_check_branch
          %612 = sbr.rel (%p610) target = $region48
        $region47: #{complex_lazy_linear_apply.2} parent=35 // pred_region
          %v613 = vld [vmem:[#allocation2] sm:$0xff]
          %v614 = vld [vmem:[#allocation2 + $0x8] sm:$0xff]
          %v615 = vld [vmem:[%s360] sm:$0x1]
          %v617 = vlaneseq
          %v618 = vshrl.u32 %v617, 7
          %v619 = vsub.s32 0, %v618
          %v620 = vrot.slane %v615, %v619
          %v622 = vadd.f32 %v613, %v620
          %v623 = vadd.f32 %v614, %v620
          %624 = vst [vmem:[%s368] sm:$0xff] %v622
          %625 = vst [vmem:[%s368 + $0x8] sm:$0xff] %v623
        $region48: #{complex_lazy_linear_apply.2} parent=35 // pred_fallthru
          _
        %s626 = smul.u32 2, %s28
        %p627 = scmp.lt.s32.totalorder %s626, 3
        %s628 = scalar_select %p627, %s626, 3
        %p629 = scmp.lt.s32.totalorder %s29, 0
        %s630 = scalar_select %p629, %s29, 0
        %s631 = sadd.s32 %s630, %s628
        %s632 = smul.addr %s631, 8
        %s633 = scalar_lea.vmem %s7, %s632
        // Predicated region
        $region49: #{complex_lazy_linear_apply.2} parent=35 // pred_check
          %p634 = pneg %p172
        $region50: #{complex_lazy_linear_apply.2} parent=35 // pred_check_branch
          %636 = sbr.rel (%p634) target = $region52
        $region51: #{complex_lazy_linear_apply.2} parent=35 // pred_region
          %s637 = smul.u32 2, %s28
        $region52: #{complex_lazy_linear_apply.2} parent=35 // pred_fallthru
          _
      $region36: #{complex_lazy_linear_apply.2} parent=5 // pred_fallthru
        _
      %p638 = scmp.le.s32.totalorder 2, %s18
      // Predicated region
      $region53: #{complex_lazy_linear_apply.2} parent=5 // pred_check
        %p639 = pneg %p638
      $region54: #{complex_lazy_linear_apply.2} parent=5 // pred_check_branch
        %641 = sbr.rel (%p639) target = $region56
      $region55: #{complex_lazy_linear_apply.2} parent=5 // pred_region
        %s642 = ssub.s32 %s18, 2
        // Predicated region
        $region57: #{complex_lazy_linear_apply.2} parent=55 // pred_check
          %p643 = pneg %p178
        $region58: #{complex_lazy_linear_apply.2} parent=55 // pred_check_branch
          %645 = sbr.rel (%p643) target = $region60
        $region59: #{complex_lazy_linear_apply.2} parent=55 // pred_region
          %s646 = smul.u32 2, %s31
          %p647 = scmp.lt.s32.totalorder %s646, 3
          %s648 = scalar_select %p647, %s646, 3
          %p649 = scmp.lt.s32.totalorder %s32, 0
          %s650 = scalar_select %p649, %s32, 0
          %s651 = sadd.s32 %s650, %s648
          %s652 = smul.addr %s651, 8
          %s653 = scalar_lea.vmem %s7, %s652
        $region60: #{complex_lazy_linear_apply.2} parent=55 // pred_fallthru
          _
      $region56: #{complex_lazy_linear_apply.2} parent=5 // pred_fallthru
        _
    $region6: #{complex_lazy_linear_apply.2} parent=1 // loop_footer
      %s22 = sadd.s32 1, %s18
    $region7: #{complex_lazy_linear_apply.2} parent=1 // loop_footer_branch
      %17 = sbr.rel target = $region3
    $region8: #{complex_lazy_linear_apply.2} parent=1 // loop_exit
      _
    %654 = vsyncpa [#allocation14], 1
    %s655 = scalar_lea.sflag [#allocation14], 1
    %656 = vsyncpa %s655, 1

</llo_original>
